<compile_context>
chip_gen: v7x
topology: tpu7x:2x2x1
jax: 0.10.0
libtpu: 0.0.40
codegen_flags: <defaults>
</compile_context>

<pallas_src>
import functools

import jax
import jax.numpy as jnp
from jax.experimental import pallas as pl
from jax.experimental.pallas import tpu as pltpu


_MIB = 1024 * 1024
# Per-generation (vmem_limit_bytes, budget for blocks + temporaries).
_GEN_CONFIG = {
    "v5e":     (32 * _MIB, 26 * _MIB),   # 128 MiB physical; 16 MiB scoped default
    "v6e":     (80 * _MIB, 68 * _MIB),   # 128 MiB physical
    "v7x":     (56 * _MIB, 44 * _MIB),   # only 64 MiB physical per TensorCore
    "default": (32 * _MIB, 26 * _MIB),
}
# Conservative allowance (rows of f32 per output row) for compiler-managed
# temporaries of the elementwise butterfly (a..d, s0/s1/d0/d1, pack buffers).
_F32_TEMP_ROWS = 10

_BF16_LOW_FIRST = None  # lazily probed: does bitcast pack elem 0 into low bits?


def _tpu_generation():
    try:
        kind = jax.devices()[0].device_kind.lower()
    except Exception:
        return "default"
    if "v5 lite" in kind or "v5lite" in kind or "v5e" in kind:
        return "v5e"
    if "v6" in kind:
        return "v6e"
    if "v7" in kind or "7x" in kind:
        return "v7x"
    return "default"


def _sublane_multiple(dtype):
    """Row-tile granularity: 8 for 32-bit, 16 for 16-bit, 32 for 8-bit dtypes."""
    return max(8, 32 // max(1, dtype.itemsize))


def _pick_row_tile(num_rows, block_row_bytes_db, temp_row_bytes, budget, sublane):
    """Largest row tile whose double-buffered blocks + temporaries fit budget."""
    tr = budget // max(1, block_row_bytes_db + temp_row_bytes)
    tr = max(sublane, (tr // sublane) * sublane)
    return min(num_rows, tr)


def _lane_dense_factorization(total):
    """View `total` flat elements as (R, L) with L a multiple of 128 (prefer
    wide) so stores are unmasked lane-dense vst.  Pads the flat length up to a
    multiple of 128 if nothing divides (caller trims afterwards)."""
    for lanes in range(2048, 127, -128):
        if total % lanes == 0:
            return total // lanes, lanes, total
    lanes = 512
    padded = pl.cdiv(total, lanes) * lanes
    return padded // lanes, lanes, padded


def _bf16_pair_low_is_first():
    """Probe whether XLA's bitcast packs element 0 into the low 16 bits."""
    global _BF16_LOW_FIRST
    if _BF16_LOW_FIRST is None:
        probe = jax.lax.bitcast_convert_type(
            jnp.array([[1.0, 0.0]], dtype=jnp.bfloat16), jnp.uint32)
        _BF16_LOW_FIRST = bool((int(probe[0]) & 0xFFFF) != 0)
    return _BF16_LOW_FIRST


def _compiler_params(vmem_limit):
    return pltpu.CompilerParams(
        dimension_semantics=("parallel",),
        vmem_limit_bytes=vmem_limit,
    )


def _butterfly_store(a, b, c, d, ll_ref, lh_ref, hl_ref, hh_ref):
    # Haar filters (PyTorch cross-correlation, weights / 2):
    #   LL = [[ 1,  1], [ 1,  1]] / 2   LH = [[-1,  1], [-1,  1]] / 2
    #   HL = [[-1, -1], [ 1,  1]] / 2   HH = [[ 1, -1], [-1,  1]] / 2
    s0 = a + b                 # top-row sum
    s1 = c + d                 # bottom-row sum
    d0 = b - a                 # top-row diff
    d1 = d - c                 # bottom-row diff
    out_dt = ll_ref.dtype
    ll_ref[...] = (0.5 * (s0 + s1)).astype(out_dt)
    lh_ref[...] = (0.5 * (d0 + d1)).astype(out_dt)
    hl_ref[...] = (0.5 * (s1 - s0)).astype(out_dt)
    hh_ref[...] = (0.5 * (d1 - d0)).astype(out_dt)


def _wavepool_kernel_stacked(x_ref, ll_ref, lh_ref, hl_ref, hh_ref):
    """4-way Haar butterfly on pre-deinterleaved polyphase slabs.

    x_ref is (4, tr, L): [x00, x01, x10, x11] with xuv = x[n, c, 2i+u, 2j+v];
    all outputs share the same lane-dense (tr, L) view.
    """
    a = x_ref[0].astype(jnp.float32)
    b = x_ref[1].astype(jnp.float32)
    c = x_ref[2].astype(jnp.float32)
    d = x_ref[3].astype(jnp.float32)
    _butterfly_store(a, b, c, d, ll_ref, lh_ref, hl_ref, hh_ref)


def _wavepool_kernel_fused_bf16(x_ref, ll_ref, lh_ref, hl_ref, hh_ref, *,
                                wo, low_first):
    """Fused deinterleave + butterfly for bf16 inputs.

    x_ref is (tr, 2*wo) uint32: lanes [0, wo) hold input row 2i and lanes
    [wo, 2*wo) hold input row 2i+1, each word packing the (2j, 2j+1) bf16
    column pair.  A bf16 value whose bits sit in the high half of a u32
    bitcasts exactly to the equal-valued f32, so shift/mask recovers both
    columns with no rounding and no extra HBM pass.
    """
    p = x_ref[...]
    top = p[:, :wo]            # words of input row 2i
    bot = p[:, wo:]            # words of input row 2i+1
    hi_mask = jnp.uint32(0xFFFF0000)

    def split(words):
        lo = pltpu.bitcast(words << 16, jnp.float32)
        hi = pltpu.bitcast(words & hi_mask, jnp.float32)
        return (lo, hi) if low_first else (hi, lo)

    a, b = split(top)          # x[2i,   2j], x[2i,   2j+1]
    c, d = split(bot)          # x[2i+1, 2j], x[2i+1, 2j+1]
    _butterfly_store(a, b, c, d, ll_ref, lh_ref, hl_ref, hh_ref)


def _wave_pool_fused_bf16(x, N, C, Ho, Wo, vmem_limit, budget):
    M = N * C * Ho
    # Free reshape + bitcast of contiguous data: one u32 word per bf16 column
    # pair; rows 2i / 2i+1 become the two lane halves of one kernel row.
    packed = jax.lax.bitcast_convert_type(
        x.reshape(N * C * 2 * Ho, Wo, 2), jnp.uint32).reshape(M, 2 * Wo)

    sublane = 16                                          # bf16 outputs
    block_row_bytes_db = 2 * (2 * Wo * 4 + 4 * Wo * 2)    # in + 4 outs, x2 buffers
    temp_row_bytes = _F32_TEMP_ROWS * Wo * 4
    tr = _pick_row_tile(M, block_row_bytes_db, temp_row_bytes, budget, sublane)
    grid = (pl.cdiv(M, tr),)

    kernel = functools.partial(_wavepool_kernel_fused_bf16, wo=Wo,
                               low_first=_bf16_pair_low_is_first())
    out_sds = jax.ShapeDtypeStruct((M, Wo), jnp.bfloat16)
    outs = pl.pallas_call(
        kernel,
        out_shape=(out_sds,) * 4,
        grid=grid,
        in_specs=[pl.BlockSpec((tr, 2 * Wo), lambda i: (i, 0))],
        out_specs=(pl.BlockSpec((tr, Wo), lambda i: (i, 0)),) * 4,
        compiler_params=_compiler_params(vmem_limit),
    )(packed)

    shape_out = (N, C, Ho, Wo)
    return tuple(o.reshape(shape_out) for o in outs)


def _wave_pool_two_pass(x, N, C, Ho, Wo, vmem_limit, budget):
    dtype = x.dtype
    M = N * C * Ho
    total = M * Wo
    R, L, padded = _lane_dense_factorization(total)

    # Single XLA strided copy packing the four polyphase slabs
    # xuv = x[n, c, 2i+u, 2j+v] into one stacked array (one input DMA
    # descriptor per grid step instead of four).
    xr = x.reshape(N, C, Ho, 2, Wo, 2)
    stacked = xr.transpose(3, 5, 0, 1, 2, 4).reshape(4, total)
    if padded != total:
        stacked = jnp.pad(stacked, ((0, 0), (0, padded - total)))
    stacked = stacked.reshape(4, R, L)

    sublane = _sublane_multiple(dtype)
    block_row_bytes_db = 2 * 8 * L * dtype.itemsize      # (4 in + 4 out) x2 buffers
    temp_row_bytes = _F32_TEMP_ROWS * L * 4
    tr = _pick_row_tile(R, block_row_bytes_db, temp_row_bytes, budget, sublane)
    grid = (pl.cdiv(R, tr),)

    out_sds = jax.ShapeDtypeStruct((R, L), dtype)
    outs = pl.pallas_call(
        _wavepool_kernel_stacked,
        out_shape=(out_sds,) * 4,
        grid=grid,
        in_specs=[pl.BlockSpec((4, tr, L), lambda i: (0, i, 0))],
        out_specs=(pl.BlockSpec((tr, L), lambda i: (i, 0)),) * 4,
        compiler_params=_compiler_params(vmem_limit),
    )(stacked)

    shape_out = (N, C, Ho, Wo)

    def unview(o):
        o = o.reshape(padded)
        if padded != total:
            o = o[:total]
        return o.reshape(shape_out)

    return tuple(unview(o) for o in outs)


def wave_pool(x):
    """Pallas equivalent of WavePool.forward.

    Args:
      x: (N, C, H, W) float array with H, W even.
    Returns:
      (LL, LH, HL, HH), each (N, C, H//2, W//2), same dtype as x.
    """
    N, C, H, W = x.shape
    assert H % 2 == 0 and W % 2 == 0, "H and W must be even"
    Ho, Wo = H // 2, W // 2
    vmem_limit, budget = _GEN_CONFIG[_tpu_generation()]

    if x.dtype == jnp.bfloat16 and Wo % 128 == 0:
        return _wave_pool_fused_bf16(x, N, C, Ho, Wo, vmem_limit, budget)
    return _wave_pool_two_pass(x, N, C, Ho, Wo, vmem_limit, budget)


def _reference_wave_pool(x):
    """Pure-JAX reference (depthwise 2x2 stride-2 Haar conv, f32 math)."""
    x = x.astype(jnp.float32)
    N, C, H, W = x.shape
    xr = x.reshape(N, C, H // 2, 2, W // 2, 2)
    a = xr[:, :, :, 0, :, 0]
    b = xr[:, :, :, 0, :, 1]
    c = xr[:, :, :, 1, :, 0]
    d = xr[:, :, :, 1, :, 1]
    return (0.5 * (a + b + c + d),
            0.5 * (-a + b - c + d),
            0.5 * (-a - b + c + d),
            0.5 * (a - b - c + d))


if __name__ == "__main__":
    # f32 input -> 2-pass stacked-deinterleave path.
    N, C, H, W = 2, 4, 16, 16
    x = jax.random.normal(jax.random.PRNGKey(0), (N, C, H, W), dtype=jnp.float32)
    outs = jax.block_until_ready(wave_pool(x))
    refs = _reference_wave_pool(x)
    for o, r in zip(outs, refs):
        assert o.shape == (N, C, H // 2, W // 2)
        assert o.dtype == x.dtype
        assert jnp.allclose(o.astype(jnp.float32), r, atol=1e-5, rtol=1e-5), \
            "f32 path mismatch vs reference"

    # bf16 input with Wo % 128 == 0 -> fused pair-bitcast deinterleave path.
    Nb, Cb, Hb, Wb = 2, 4, 32, 256
    xb = jax.random.normal(jax.random.PRNGKey(1), (Nb, Cb, Hb, Wb),
                           dtype=jnp.bfloat16)
    outs_b = jax.block_until_ready(wave_pool(xb))
    refs_b = _reference_wave_pool(xb)
    for o, r in zip(outs_b, refs_b):
        assert o.shape == (Nb, Cb, Hb // 2, Wb // 2)
        assert o.dtype == jnp.bfloat16
        assert jnp.allclose(o.astype(jnp.float32), r, atol=2e-2, rtol=2e-2), \
            "bf16 fused path mismatch vs reference"

    print("KERNEL_OK")
</pallas_src>

<mosaic_0001>
module attributes {stable_mosaic.version = 11 : i64} {
  func.func @_wavepool_kernel_stacked(%arg0: i32, %arg1: memref<4x1x512xf32, #tpu.memory_space<vmem>>, %arg2: memref<1x512xf32, #tpu.memory_space<vmem>>, %arg3: memref<1x512xf32, #tpu.memory_space<vmem>>, %arg4: memref<1x512xf32, #tpu.memory_space<vmem>>, %arg5: memref<1x512xf32, #tpu.memory_space<vmem>>) attributes {dimension_semantics = [#tpu.dimension_semantics<parallel>], iteration_bounds = array<i64: 1>, scalar_prefetch = 0 : i64, scratch_operands = 0 : i64, tpu.core_type = #tpu.core_type<tc>, window_params = [{transform_indices = @transform_0, window_bounds = array<i64: 4, 1, 512>}, {transform_indices = @transform_1, window_bounds = array<i64: 1, 512>}, {transform_indices = @transform_2, window_bounds = array<i64: 1, 512>}, {transform_indices = @transform_3, window_bounds = array<i64: 1, 512>}, {transform_indices = @transform_4, window_bounds = array<i64: 1, 512>}]} {
    %c0 = arith.constant 0 : index
    %c0_0 = arith.constant 0 : index
    %c0_1 = arith.constant 0 : index
    %0 = vector.load %arg1[%c0, %c0_0, %c0_1] : memref<4x1x512xf32, #tpu.memory_space<vmem>>, vector<1x1x512xf32>
    %1 = vector.shape_cast %0 : vector<1x1x512xf32> to vector<1x512xf32>
    %c1 = arith.constant 1 : index
    %c0_2 = arith.constant 0 : index
    %c0_3 = arith.constant 0 : index
    %2 = vector.load %arg1[%c1, %c0_2, %c0_3] : memref<4x1x512xf32, #tpu.memory_space<vmem>>, vector<1x1x512xf32>
    %3 = vector.shape_cast %2 : vector<1x1x512xf32> to vector<1x512xf32>
    %c2 = arith.constant 2 : index
    %c0_4 = arith.constant 0 : index
    %c0_5 = arith.constant 0 : index
    %4 = vector.load %arg1[%c2, %c0_4, %c0_5] : memref<4x1x512xf32, #tpu.memory_space<vmem>>, vector<1x1x512xf32>
    %5 = vector.shape_cast %4 : vector<1x1x512xf32> to vector<1x512xf32>
    %c3 = arith.constant 3 : index
    %c0_6 = arith.constant 0 : index
    %c0_7 = arith.constant 0 : index
    %6 = vector.load %arg1[%c3, %c0_6, %c0_7] : memref<4x1x512xf32, #tpu.memory_space<vmem>>, vector<1x1x512xf32>
    %7 = vector.shape_cast %6 : vector<1x1x512xf32> to vector<1x512xf32>
    %8 = arith.addf %1, %3 : vector<1x512xf32>
    %9 = arith.addf %5, %7 : vector<1x512xf32>
    %10 = arith.subf %3, %1 : vector<1x512xf32>
    %11 = arith.subf %7, %5 : vector<1x512xf32>
    %12 = arith.addf %8, %9 : vector<1x512xf32>
    %cst = arith.constant 5.000000e-01 : f32
    %13 = vector.broadcast %cst : f32 to vector<1x512xf32>
    %14 = arith.mulf %13, %12 : vector<1x512xf32>
    %c0_8 = arith.constant 0 : index
    %c0_9 = arith.constant 0 : index
    %15 = vector.load %arg2[%c0_8, %c0_9] : memref<1x512xf32, #tpu.memory_space<vmem>>, vector<1x512xf32>
    tpu.vector_store %arg2[%c0_8, %c0_9], %14 {strides = array<i32>} : memref<1x512xf32, #tpu.memory_space<vmem>>, vector<1x512xf32>,
    %16 = arith.addf %10, %11 : vector<1x512xf32>
    %cst_10 = arith.constant 5.000000e-01 : f32
    %17 = vector.broadcast %cst_10 : f32 to vector<1x512xf32>
    %18 = arith.mulf %17, %16 : vector<1x512xf32>
    %c0_11 = arith.constant 0 : index
    %c0_12 = arith.constant 0 : index
    %19 = vector.load %arg3[%c0_11, %c0_12] : memref<1x512xf32, #tpu.memory_space<vmem>>, vector<1x512xf32>
    tpu.vector_store %arg3[%c0_11, %c0_12], %18 {strides = array<i32>} : memref<1x512xf32, #tpu.memory_space<vmem>>, vector<1x512xf32>,
    %20 = arith.subf %9, %8 : vector<1x512xf32>
    %cst_13 = arith.constant 5.000000e-01 : f32
    %21 = vector.broadcast %cst_13 : f32 to vector<1x512xf32>
    %22 = arith.mulf %21, %20 : vector<1x512xf32>
    %c0_14 = arith.constant 0 : index
    %c0_15 = arith.constant 0 : index
    %23 = vector.load %arg4[%c0_14, %c0_15] : memref<1x512xf32, #tpu.memory_space<vmem>>, vector<1x512xf32>
    tpu.vector_store %arg4[%c0_14, %c0_15], %22 {strides = array<i32>} : memref<1x512xf32, #tpu.memory_space<vmem>>, vector<1x512xf32>,
    %24 = arith.subf %11, %10 : vector<1x512xf32>
    %cst_16 = arith.constant 5.000000e-01 : f32
    %25 = vector.broadcast %cst_16 : f32 to vector<1x512xf32>
    %26 = arith.mulf %25, %24 : vector<1x512xf32>
    %c0_17 = arith.constant 0 : index
    %c0_18 = arith.constant 0 : index
    %27 = vector.load %arg5[%c0_17, %c0_18] : memref<1x512xf32, #tpu.memory_space<vmem>>, vector<1x512xf32>
    tpu.vector_store %arg5[%c0_17, %c0_18], %26 {strides = array<i32>} : memref<1x512xf32, #tpu.memory_space<vmem>>, vector<1x512xf32>,
    return
  }
  func.func @transform_0(%arg0: i32) -> (i32, i32, i32) {
    %c0_i32 = arith.constant 0 : i32
    %c0_i32_0 = arith.constant 0 : i32
    %c0_i32_1 = arith.constant 0 : i32
    return %c0_i32, %arg0, %c0_i32_0 : i32, i32, i32
  }
  func.func @transform_1(%arg0: i32) -> (i32, i32) {
    %c0_i32 = arith.constant 0 : i32
    %c0_i32_0 = arith.constant 0 : i32
    return %arg0, %c0_i32 : i32, i32
  }
  func.func @transform_2(%arg0: i32) -> (i32, i32) {
    %c0_i32 = arith.constant 0 : i32
    %c0_i32_0 = arith.constant 0 : i32
    return %arg0, %c0_i32 : i32, i32
  }
  func.func @transform_3(%arg0: i32) -> (i32, i32) {
    %c0_i32 = arith.constant 0 : i32
    %c0_i32_0 = arith.constant 0 : i32
    return %arg0, %c0_i32 : i32, i32
  }
  func.func @transform_4(%arg0: i32) -> (i32, i32) {
    %c0_i32 = arith.constant 0 : i32
    %c0_i32_0 = arith.constant 0 : i32
    return %arg0, %c0_i32 : i32, i32
  }
}

</mosaic_0001>

<llo_original>
// kernel: tpu_custom_call.1
$region0: #{tpu_custom_call.1}
  #allocation0 [shape = 'u32[]', space=smem, size = 0x4, offset = 0x4, fixed_abs, tag = 'smem constant byte address 0x4 - core index']
  #allocation1 [shape = 'u32[144,128]{1,0:T(1,128)}', space=vmem, size = 0x12000, scoped, tag = 'internal scratch']
  %s0 = inlined_call_operand.hbm [shape: f32[4,1,512], index: 0, kind: input, shape index: {}]
  %s1 = inlined_call_operand.hbm [shape: f32[1,512], index: 1, kind: output, shape index: {0}]
  %s2 = inlined_call_operand.hbm [shape: f32[1,512], index: 2, kind: output, shape index: {1}]
  %s3 = inlined_call_operand.hbm [shape: f32[1,512], index: 3, kind: output, shape index: {2}]
  %s4 = inlined_call_operand.hbm [shape: f32[1,512], index: 4, kind: output, shape index: {3}]
  %5 = xla_tuple %s1, %s2, %s3, %s4
  %s6 = sld [smem:[#allocation0]]
  $region42: #{tpu_custom_call.1} parent=0
    _
  %s8 = ssub.s32 1, %s6
  %s9 = scalar_select 0, %s8, %s6
  $region1: #{tpu_custom_call.1} parent=0
    #allocation2 [shape = 'u8[8192]{0}', space=vmem, size = 0x2000, scoped, tag = 'input window, operand 0, single buffered']
    #allocation3 [shape = 's32[1]{0}', space=sflag, size = 0x4, scoped, tag = 'scoped memory for tpu_custom_call.1']
    #allocation4 [shape = 's32[1]{0}', space=sflag, size = 0x4, scoped, tag = 'scoped memory for tpu_custom_call.1']
    #allocation5 [shape = 'u8[2048]{0}', space=vmem, size = 0x800, scoped, tag = 'output window, operand 0, single buffered']
    #allocation6 [shape = 'u8[2048]{0}', space=vmem, size = 0x800, scoped, tag = 'output window, operand 1, single buffered']
    #allocation7 [shape = 's32[1]{0}', space=sflag, size = 0x4, scoped, tag = 'scoped memory for tpu_custom_call.1']
    #allocation8 [shape = 'u8[2048]{0}', space=vmem, size = 0x800, scoped, tag = 'output window, operand 2, single buffered']
    #allocation9 [shape = 'u8[2048]{0}', space=vmem, size = 0x800, scoped, tag = 'output window, operand 3, single buffered']
    #allocation10 [shape = 's32[1]{0}', space=sflag, size = 0x4, scoped, tag = 'scoped memory for tpu_custom_call.1']
    %10 = vsyncpa [#allocation3], 0
    %11 = vsyncpa [#allocation4], 0
    %12 = vsyncpa [#allocation7], 0
    %13 = vsyncpa [#allocation10], 0
    // Predicated region
    $region2: #{tpu_custom_call.1} parent=1 // pred_check
      _
    $region3: #{tpu_custom_call.1} parent=1 // pred_check_branch
      %15 = sbr.rel (0) target = $region5
    $region4: #{tpu_custom_call.1} parent=1 // pred_region
      %s17 = ssub.s32 256, 256
      %18 = vsyncadd [#allocation3], %s17
      %s19 = sshll.u32 [#allocation2], 4
      %s20 = int_to_ptr.vmem [resolvable:$true] %s19
      %25 = dma.hbm_to_vmem [thread:$0]  %s0, 256, %s20, [#allocation3], 64, 64, 4
    $region5: #{tpu_custom_call.1} parent=1 // pred_fallthru
      _
    // Predicated region
    $region6: #{tpu_custom_call.1} parent=1 // pred_check
      _
    $region7: #{tpu_custom_call.1} parent=1 // pred_check_branch
      %27 = sbr.rel (0) target = $region9
    $region8: #{tpu_custom_call.1} parent=1 // pred_region
      %28 = dma.done [#allocation3], 256
    $region9: #{tpu_custom_call.1} parent=1 // pred_fallthru
      _
    %v29 = vld [vmem:[#allocation2] sm:$0xf]
    %s30 = scalar_lea.vmem [#allocation2], 4
    %v31 = vld [vmem:[%s30] sm:$0xf]
    %s32 = scalar_lea.vmem [#allocation2], 8
    %v33 = vld [vmem:[%s32] sm:$0xf]
    %s34 = scalar_lea.vmem [#allocation2], 12
    %v35 = vld [vmem:[%s34] sm:$0xf]
    %v36 = vadd.f32 %v29, %v31
    %v37 = vadd.f32 %v33, %v35
    %v38 = vsub.f32 %v31, %v29
    %v39 = vsub.f32 %v35, %v33
    %v40 = vadd.f32 %v36, %v37
    %v41 = vmul.f32 %v40, 0.5
    %v42 = vlaneseq
    %vm43 = vcmp.ge.s32.totalorder %v42, 0
    %vm44 = vcmp.lt.s32.totalorder %v42, 512
    %vm45 = vmand %vm43, %vm44
    %46 = vst.msk [vmem:[#allocation5] sm:$0xf] %vm45, %v41
    %v47 = vadd.f32 %v38, %v39
    %v48 = vmul.f32 %v47, 0.5
    %49 = vst.msk [vmem:[#allocation6] sm:$0xf] %vm45, %v48
    %v50 = vsub.f32 %v37, %v36
    %v51 = vmul.f32 %v50, 0.5
    %52 = vst.msk [vmem:[#allocation8] sm:$0xf] %vm45, %v51
    %v53 = vsub.f32 %v39, %v38
    %v54 = vmul.f32 %v53, 0.5
    %55 = vst.msk [vmem:[#allocation9] sm:$0xf] %vm45, %v54
    // Predicated region
    $region10: #{tpu_custom_call.1} parent=1 // pred_check
      _
    $region11: #{tpu_custom_call.1} parent=1 // pred_check_branch
      %57 = sbr.rel (0) target = $region13
    $region12: #{tpu_custom_call.1} parent=1 // pred_region
      %s59 = ssub.s32 64, 64
      %60 = vsyncadd [#allocation4], %s59
      %s62 = sshll.u32 [#allocation5], 4
      %s63 = int_to_ptr.vmem [resolvable:$true] %s62
      %65 = dma.vmem_to_hbm [thread:$0]  %s63, 64, %s1, [#allocation4]
    $region13: #{tpu_custom_call.1} parent=1 // pred_fallthru
      _
    // Predicated region
    $region14: #{tpu_custom_call.1} parent=1 // pred_check
      _
    $region15: #{tpu_custom_call.1} parent=1 // pred_check_branch
      %67 = sbr.rel (0) target = $region17
    $region16: #{tpu_custom_call.1} parent=1 // pred_region
      %s69 = ssub.s32 64, 64
      %70 = vsyncadd [#allocation7], %s69
      %s72 = sshll.u32 [#allocation6], 4
      %s73 = int_to_ptr.vmem [resolvable:$true] %s72
      %75 = dma.vmem_to_hbm [thread:$0]  %s73, 64, %s2, [#allocation7]
    $region17: #{tpu_custom_call.1} parent=1 // pred_fallthru
      _
    // Predicated region
    $region18: #{tpu_custom_call.1} parent=1 // pred_check
      _
    $region19: #{tpu_custom_call.1} parent=1 // pred_check_branch
      %77 = sbr.rel (0) target = $region21
    $region20: #{tpu_custom_call.1} parent=1 // pred_region
      %s79 = ssub.s32 64, 64
      %80 = vsyncadd [#allocation7], %s79
      %s82 = sshll.u32 [#allocation8], 4
      %s83 = int_to_ptr.vmem [resolvable:$true] %s82
      %85 = dma.vmem_to_hbm [thread:$0]  %s83, 64, %s3, [#allocation7]
    $region21: #{tpu_custom_call.1} parent=1 // pred_fallthru
      _
    // Predicated region
    $region22: #{tpu_custom_call.1} parent=1 // pred_check
      _
    $region23: #{tpu_custom_call.1} parent=1 // pred_check_branch
      %87 = sbr.rel (0) target = $region25
    $region24: #{tpu_custom_call.1} parent=1 // pred_region
      %s89 = ssub.s32 64, 64
      %90 = vsyncadd [#allocation10], %s89
      %s92 = sshll.u32 [#allocation9], 4
      %s93 = int_to_ptr.vmem [resolvable:$true] %s92
      %95 = dma.vmem_to_hbm [thread:$0]  %s93, 64, %s4, [#allocation10]
    $region25: #{tpu_custom_call.1} parent=1 // pred_fallthru
      _
    // Predicated region
    $region26: #{tpu_custom_call.1} parent=1 // pred_check
      _
    $region27: #{tpu_custom_call.1} parent=1 // pred_check_branch
      %97 = sbr.rel (0) target = $region29
    $region28: #{tpu_custom_call.1} parent=1 // pred_region
      %98 = dma.done [#allocation4], 64
    $region29: #{tpu_custom_call.1} parent=1 // pred_fallthru
      _
    // Predicated region
    $region30: #{tpu_custom_call.1} parent=1 // pred_check
      _
    $region31: #{tpu_custom_call.1} parent=1 // pred_check_branch
      %100 = sbr.rel (0) target = $region33
    $region32: #{tpu_custom_call.1} parent=1 // pred_region
      %101 = dma.done [#allocation7], 64
    $region33: #{tpu_custom_call.1} parent=1 // pred_fallthru
      _
    // Predicated region
    $region34: #{tpu_custom_call.1} parent=1 // pred_check
      _
    $region35: #{tpu_custom_call.1} parent=1 // pred_check_branch
      %103 = sbr.rel (0) target = $region37
    $region36: #{tpu_custom_call.1} parent=1 // pred_region
      %104 = dma.done [#allocation7], 64
    $region37: #{tpu_custom_call.1} parent=1 // pred_fallthru
      _
    // Predicated region
    $region38: #{tpu_custom_call.1} parent=1 // pred_check
      _
    $region39: #{tpu_custom_call.1} parent=1 // pred_check_branch
      %106 = sbr.rel (0) target = $region41
    $region40: #{tpu_custom_call.1} parent=1 // pred_region
      %107 = dma.done [#allocation10], 64
    $region41: #{tpu_custom_call.1} parent=1 // pred_fallthru
      _
    %108 = vsyncpa [#allocation3], 1
    %109 = vsyncpa [#allocation4], 1
    %110 = vsyncpa [#allocation7], 1
    %111 = vsyncpa [#allocation10], 1

</llo_original>
